<compile_context>
chip_gen: v5e
topology: v5e:2x2
jax: 0.10.0
libtpu: 0.0.40
codegen_flags: <defaults>
</compile_context>

<pallas_src>
import functools
import numpy as np
import jax
import jax.numpy as jnp
from jax.experimental import pallas as pl
from jax.experimental.pallas import tpu as pltpu

BN_EPS = 1e-5


def _elu(x):
    # where() is a select, so exp() overflowing to +inf on the discarded x>0 lanes is harmless;
    # dropping the extra min() clamp removes one full (4W, TN) VPU op per ELU.
    return jnp.where(x > 0.0, x, jnp.exp(x) - 1.0)


def _sigmoid(x):
    # tanh formulation -> transcendental goes to the EUP slot instead of a VALU divide chain.
    return 0.5 * (jnp.tanh(0.5 * x) + 1.0)


def _make_kernel(depth, constraint, const):
    inv_const = 1.0 / const

    def kernel(x_ref, bval_ref, w0t_ref, wht_ref, bht_ref,
               wpt_ref, bp_ref, lo_ref, span_ref, xout_ref, params_ref):
        # fused layer 0 (BN + bias folded; bias enters via the appended ones row of x^T):
        #   (4W, B+1)[bf16] @ (B+1, TN)[bf16] -> (4W, TN)[f32]
        h = jnp.dot(w0t_ref[...], x_ref[...], preferred_element_type=jnp.float32)
        h = _elu(h)

        # fused hidden layers: block-diagonal (4W, 4W)[bf16] @ (4W, TN)[bf16]; Dropout = identity
        for i in range(depth - 1):
            h = jnp.dot(wht_ref[i], h.astype(jnp.bfloat16),
                        preferred_element_type=jnp.float32) + bht_ref[i]
            h = _elu(h)

        # fused output heads, duplicated to 8 rows: rows 0-3 -> unnormalised, rows 4-7 -> normalised
        p = jnp.dot(wpt_ref[...], h.astype(jnp.bfloat16),
                    preferred_element_type=jnp.float32) + bp_ref[...]          # (8, TN)
        if constraint == 'sigmoid':
            p = _sigmoid(p)
        else:  # 'relu6'
            p = jnp.clip(p, 0.0, 6.0)
        if const != 1.0:
            p = p * inv_const
        params = lo_ref[...] + p * span_ref[...]                               # (8, TN)
        params_ref[...] = params

        # bi-exponential IVIM signal model, broadcast (1,TN) x (B,1) -> (B,TN)
        Dt = params[0:1, :]
        Fp = params[1:2, :]
        Dp = params[2:3, :]
        S0 = params[3:4, :]
        bvals = bval_ref[...]                                                  # (B, 1)
        xout_ref[...] = S0 * (Fp * jnp.exp(-bvals * Dp) + (1.0 - Fp) * jnp.exp(-bvals * Dt))

    return kernel


def pack_params(params, bounds, depth, width):
    """One-time repack: fold eval-mode BN into the Linears, fuse the 4 encoders into
    lane-dense matrices (bf16 for the MXU operands), transpose for the (features, batch)
    layout, and fold the layer-0 bias into an extra weight column."""
    W = width
    g = params['gamma'][:, :, 0, :]                                       # (4, depth, W)
    v = params['var'][:, :, 0, :]
    m = params['mean'][:, :, 0, :]
    bt = params['beta'][:, :, 0, :]
    scale = g * jax.lax.rsqrt(v + BN_EPS)                                 # (4, depth, W)
    shift = bt - m * scale                                                # (4, depth, W)

    # layer 0: Linear(B -> W) per encoder, fused to (B, 4W); bias folded as an extra input row
    w0_eff = params['w0'] * scale[:, 0][:, None, :]                       # (4, B, W)
    b0_eff = params['b0'][:, 0, :] * scale[:, 0] + shift[:, 0]            # (4, W)
    w0f = jnp.concatenate([w0_eff[e] for e in range(4)], axis=1)          # (B, 4W)
    b0f = jnp.reshape(b0_eff, (1, 4 * W))                                 # (1, 4W)
    w0_aug = jnp.concatenate([w0f, b0f], axis=0)                          # (B+1, 4W)
    w0t = w0_aug.T.astype(jnp.bfloat16)                                   # (4W, B+1)

    # hidden layers: Linear(W -> W) per encoder, fused to block-diagonal (4W, 4W)
    whts, bhts = [], []
    for i in range(1, depth):
        bd = jnp.zeros((4 * W, 4 * W), jnp.float32)
        for e in range(4):
            w_eff = params['wh'][e, i - 1] * scale[e, i][None, :]         # (W, W)
            bd = bd.at[e * W:(e + 1) * W, e * W:(e + 1) * W].set(w_eff)
        b_eff = params['bh'][:, i - 1, 0, :] * scale[:, i] + shift[:, i]  # (4, W)
        whts.append(bd.T)                                                 # transposed for W^T @ x
        bhts.append(jnp.reshape(b_eff, (4 * W, 1)))
    if depth > 1:
        wht = jnp.stack(whts).astype(jnp.bfloat16)                        # (depth-1, 4W, 4W)
        bht = jnp.stack(bhts)                                             # (depth-1, 4W, 1) f32
    else:
        wht = jnp.zeros((1, 4 * W, 4 * W), jnp.bfloat16)                  # unused dummy
        bht = jnp.zeros((1, 4 * W, 1), jnp.float32)

    # final Linear(W -> 1) per encoder, fused to (4W, 4), duplicated to 8 rows so the kernel
    # produces [p_unorm; p_norm] with a single affine.
    wp = jnp.zeros((4 * W, 4), jnp.float32)
    for e in range(4):
        wp = wp.at[e * W:(e + 1) * W, e].set(params['wout'][e, 0])
    wpt = wp.T                                                            # (4, 4W)
    wpt8 = jnp.concatenate([wpt, wpt], axis=0).astype(jnp.bfloat16)       # (8, 4W)
    bp = jnp.reshape(params['bout'], (4, 1)).astype(jnp.float32)
    bp8 = jnp.concatenate([bp, bp], axis=0)                               # (8, 1)

    lo = jnp.reshape(bounds[0], (4, 1)).astype(jnp.float32)
    span = jnp.reshape(bounds[1] - bounds[0], (4, 1)).astype(jnp.float32)
    lo8 = jnp.concatenate([lo, jnp.zeros((4, 1), jnp.float32)], axis=0)   # bottom rows: identity
    span8 = jnp.concatenate([span, jnp.ones((4, 1), jnp.float32)], axis=0)

    return {'w0t': w0t, 'wht': wht, 'bht': bht,
            'wpt': wpt8, 'bp': bp8, 'lo': lo8, 'span': span8}


def _round_up(v, m):
    return ((v + m - 1) // m) * m


def _pick_tile(N, tn_max):
    """Choose (TN, Npad): TN a multiple of 128, Npad a multiple of TN, >=2 grid steps for
    mid/large batches so v7x's two TensorCores both get work."""
    tn_max = max(128, (int(tn_max) // 128) * 128)          # lane blocks must be 128-divisible
    npad = max(128, _round_up(N, 128))
    if npad > tn_max:
        tn = tn_max
        npad = _round_up(npad, tn)
    elif npad >= 256:
        tn = _round_up(npad // 2, 128)                     # 2 grid steps -> megacore sharding
        npad = 2 * tn
    else:
        tn = npad                                          # tiny batch: single 128-lane tile
    return tn, npad


@functools.partial(jax.jit, static_argnames=('depth', 'constraint', 'tn', 'npad'))
def _forward_jit(x, bvals, packed, *, depth, constraint, tn, npad):
    const = 6.0 if constraint == 'relu6' else 1.0
    N, B = x.shape

    # lane-dense layout (batch on lanes) with a constant-1 row appended (layer-0 bias fold).
    # The bf16 cast + pad + transpose stay inside this jit so XLA fuses the layout plumbing
    # with the pallas_call instead of doing separate HBM passes.
    xT = (jnp.zeros((B + 1, npad), jnp.bfloat16)
          .at[:B, :N].set(x.astype(jnp.bfloat16).T)
          .at[B, :].set(1.0))

    kernel = _make_kernel(depth, constraint, const)
    vmem_full = pl.BlockSpec(memory_space=pltpu.MemorySpace.VMEM)

    sig_T, params_T = pl.pallas_call(
        kernel,
        grid=(npad // tn,),
        in_specs=[
            pl.BlockSpec((B + 1, tn), lambda i: (0, i)),   # x^T tile (+ ones row), batch on lanes
            vmem_full,                                     # bvalues (B, 1)
            vmem_full,                                     # w0t (4W, B+1) bf16
            vmem_full, vmem_full,                          # wht (depth-1,4W,4W) bf16, bht (depth-1,4W,1)
            vmem_full, vmem_full,                          # wpt (8,4W) bf16, bp (8,1)
            vmem_full, vmem_full,                          # lo (8,1), span (8,1)
        ],
        out_specs=[
            pl.BlockSpec((B, tn), lambda i: (0, i)),       # predicted signal (B, N) - lane dense
            pl.BlockSpec((8, tn), lambda i: (0, i)),       # [p_unorm; p_norm] (8, N) - lane dense
        ],
        out_shape=[
            jax.ShapeDtypeStruct((B, npad), jnp.float32),
            jax.ShapeDtypeStruct((8, npad), jnp.float32),
        ],
        compiler_params=pltpu.CompilerParams(
            dimension_semantics=("parallel",),
            vmem_limit_bytes=48 * 1024 * 1024),            # fits TN=8192 f32 intermediates; <64 MiB (v7x)
    )(xT, bvals, packed['w0t'], packed['wht'], packed['bht'],
      packed['wpt'], packed['bp'], packed['lo'], packed['span'])

    # API-facing (N, B)/(N, 4) layout; consumers that can take the lane-dense (B/8, N) slabs
    # directly should use sig_T / params_T to skip these transposes.
    X_pred = sig_T[:, :N].T
    params_unorm = params_T[:4, :N].T
    params_norm = params_T[4:, :N].T
    return X_pred, params_unorm, params_norm


def ivim_net_forward(x, bvalues, params, bounds, *, depth, constraint='sigmoid', tn_max=8192):
    """Fused forward pass of Net. Returns (X_pred, params_unorm, params_norm)."""
    if constraint not in ('sigmoid', 'relu6'):
        raise ValueError("constraint must be 'relu6' or 'sigmoid'")
    N, B = x.shape
    W = params['w0'].shape[-1]
    packed = pack_params(params, bounds, depth, W)
    tn, npad = _pick_tile(N, tn_max)
    bvals = bvalues.reshape(B, 1).astype(jnp.float32)
    return _forward_jit(x, bvals, packed, depth=depth, constraint=constraint, tn=tn, npad=npad)


def ivim_net_reference(x, bvalues, params, bounds, *, depth, constraint='sigmoid'):
    """Pure-JAX f32 reference (per-encoder, un-folded BN) for correctness checking."""
    const = 6.0 if constraint == 'relu6' else 1.0
    bvals = bvalues.reshape(1, -1)
    p_norm = []
    for e in range(4):
        h = x @ params['w0'][e] + params['b0'][e]
        h = params['gamma'][e, 0] * (h - params['mean'][e, 0]) * jax.lax.rsqrt(params['var'][e, 0] + BN_EPS) + params['beta'][e, 0]
        h = jnp.where(h > 0, h, jnp.exp(jnp.minimum(h, 0.0)) - 1.0)
        for i in range(1, depth):
            h = h @ params['wh'][e, i - 1] + params['bh'][e, i - 1]
            h = params['gamma'][e, i] * (h - params['mean'][e, i]) * jax.lax.rsqrt(params['var'][e, i] + BN_EPS) + params['beta'][e, i]
            h = jnp.where(h > 0, h, jnp.exp(jnp.minimum(h, 0.0)) - 1.0)
        p = jnp.sum(h * params['wout'][e], axis=-1, keepdims=True) + params['bout'][e]
        p = 1.0 / (1.0 + jnp.exp(-p)) if constraint == 'sigmoid' else jnp.clip(p, 0.0, 6.0)
        p_norm.append(p / const)
    p_unorm = [bounds[0, j] + p_norm[j] * (bounds[1, j] - bounds[0, j]) for j in range(4)]
    Dt_u, Fp_u, Dp_u, S0_u = p_unorm
    sig = S0_u * (Fp_u * jnp.exp(-bvals * Dp_u) + (1.0 - Fp_u) * jnp.exp(-bvals * Dt_u))
    return sig, jnp.concatenate(p_unorm, axis=1), jnp.concatenate(p_norm, axis=1)


def init_params(key, num_bvalues, width, depth):
    """Deterministic synthetic parameters (PyTorch nn.Linear-style uniform init)."""
    def linear_init(k, fan_in, shape):
        bound = 1.0 / np.sqrt(fan_in)
        return jax.random.uniform(k, shape, jnp.float32, -bound, bound)

    keys = jax.random.split(key, 10)
    params = {
        'w0':   linear_init(keys[0], num_bvalues, (4, num_bvalues, width)),
        'b0':   linear_init(keys[1], num_bvalues, (4, 1, width)),
        'wh':   linear_init(keys[2], width, (4, depth - 1, width, width)),
        'bh':   linear_init(keys[3], width, (4, depth - 1, 1, width)),
        # BatchNorm1d running stats / affine (eval mode), made non-trivial on purpose
        'gamma': jax.random.uniform(keys[4], (4, depth, 1, width), jnp.float32, 0.8, 1.2),
        'beta':  jax.random.uniform(keys[5], (4, depth, 1, width), jnp.float32, -0.1, 0.1),
        'mean':  jax.random.uniform(keys[6], (4, depth, 1, width), jnp.float32, -0.2, 0.2),
        'var':   jax.random.uniform(keys[7], (4, depth, 1, width), jnp.float32, 0.5, 1.5),
        'wout': linear_init(keys[8], width, (4, 1, width)),
        'bout': linear_init(keys[9], width, (4,)),
    }
    return params


if __name__ == "__main__":
    # hparams: width=32, depth=2, dropout_p (inactive in eval), constraint='sigmoid'
    N, WIDTH, DEPTH = 16, 32, 2
    bvalues = jnp.array([0., 5., 10., 25., 50., 100., 200., 400.], dtype=jnp.float32)
    B = bvalues.shape[0]
    bounds = jnp.array([[0.0, 0.0, 0.005, 0.7],
                        [0.005, 0.7, 0.3, 1.3]], dtype=jnp.float32)   # net_pars.bounds

    key = jax.random.PRNGKey(0)
    k_x, k_p = jax.random.split(key)
    x = jax.random.uniform(k_x, (N, B), jnp.float32, 0.2, 1.2)
    params = init_params(k_p, B, WIDTH, DEPTH)

    X_pred, params_unorm, params_norm = ivim_net_forward(
        x, bvalues, params, bounds, depth=DEPTH, constraint='sigmoid')
    jax.block_until_ready((X_pred, params_unorm, params_norm))

    X_ref, pu_ref, pn_ref = ivim_net_reference(
        x, bvalues, params, bounds, depth=DEPTH, constraint='sigmoid')
    # Tolerances loosened vs. the f32 version because the MXU operands are now bf16
    # (f32 accumulation); structural errors would still be orders of magnitude larger.
    np.testing.assert_allclose(np.asarray(X_pred), np.asarray(X_ref), rtol=2e-2, atol=2e-3)
    np.testing.assert_allclose(np.asarray(params_unorm), np.asarray(pu_ref), rtol=2e-2, atol=2e-3)
    np.testing.assert_allclose(np.asarray(params_norm), np.asarray(pn_ref), rtol=2e-2, atol=2e-3)

    print("KERNEL_OK")
</pallas_src>

<mosaic_0001>
module attributes {stable_mosaic.version = 11 : i64} {
  func.func @kernel(%arg0: i32, %arg1: memref<9x128xbf16, #tpu.memory_space<vmem>>, %arg2: memref<8x1xf32, #tpu.memory_space<vmem>>, %arg3: memref<128x9xbf16, #tpu.memory_space<vmem>>, %arg4: memref<1x128x128xbf16, #tpu.memory_space<vmem>>, %arg5: memref<1x128x1xf32, #tpu.memory_space<vmem>>, %arg6: memref<8x128xbf16, #tpu.memory_space<vmem>>, %arg7: memref<8x1xf32, #tpu.memory_space<vmem>>, %arg8: memref<8x1xf32, #tpu.memory_space<vmem>>, %arg9: memref<8x1xf32, #tpu.memory_space<vmem>>, %arg10: memref<8x128xf32, #tpu.memory_space<vmem>>, %arg11: memref<8x128xf32, #tpu.memory_space<vmem>>) attributes {dimension_semantics = [#tpu.dimension_semantics<parallel>], iteration_bounds = array<i64: 1>, scalar_prefetch = 0 : i64, scratch_operands = 0 : i64, tpu.core_type = #tpu.core_type<tc>, window_params = [{transform_indices = @transform_0, window_bounds = array<i64: 9, 128>}, {pipeline_mode = #tpu.pipeline_mode<synchronous>, transform_indices = @transform_1, window_bounds = array<i64: 8, 1>}, {pipeline_mode = #tpu.pipeline_mode<synchronous>, transform_indices = @transform_2, window_bounds = array<i64: 128, 9>}, {pipeline_mode = #tpu.pipeline_mode<synchronous>, transform_indices = @transform_3, window_bounds = array<i64: 1, 128, 128>}, {pipeline_mode = #tpu.pipeline_mode<synchronous>, transform_indices = @transform_4, window_bounds = array<i64: 1, 128, 1>}, {pipeline_mode = #tpu.pipeline_mode<synchronous>, transform_indices = @transform_5, window_bounds = array<i64: 8, 128>}, {pipeline_mode = #tpu.pipeline_mode<synchronous>, transform_indices = @transform_6, window_bounds = array<i64: 8, 1>}, {pipeline_mode = #tpu.pipeline_mode<synchronous>, transform_indices = @transform_7, window_bounds = array<i64: 8, 1>}, {pipeline_mode = #tpu.pipeline_mode<synchronous>, transform_indices = @transform_8, window_bounds = array<i64: 8, 1>}, {transform_indices = @transform_9, window_bounds = array<i64: 8, 128>}, {transform_indices = @transform_10, window_bounds = array<i64: 8, 128>}]} {
    %c0 = arith.constant 0 : index
    %c0_0 = arith.constant 0 : index
    %0 = vector.load %arg3[%c0, %c0_0] : memref<128x9xbf16, #tpu.memory_space<vmem>>, vector<128x9xbf16>
    %c0_1 = arith.constant 0 : index
    %c0_2 = arith.constant 0 : index
    %1 = vector.load %arg1[%c0_1, %c0_2] : memref<9x128xbf16, #tpu.memory_space<vmem>>, vector<9x128xbf16>
    %cst = arith.constant dense<0.000000e+00> : vector<128x128xf32>
    %2 = tpu.matmul %0, %1, %cst {dimension_numbers = #tpu.dot_dimension_numbers<[1], [0], [0], [1], [0, 0, 1, 1], [], []>} : vector<128x9xbf16>, vector<9x128xbf16>, vector<128x128xf32> -> vector<128x128xf32>
    %cst_3 = arith.constant 0.000000e+00 : f32
    %3 = vector.broadcast %cst_3 : f32 to vector<128x128xf32>
    %4 = arith.cmpf ogt, %2, %3 : vector<128x128xf32>
    %5 = math.exp %2 : vector<128x128xf32>
    %cst_4 = arith.constant 1.000000e+00 : f32
    %6 = vector.broadcast %cst_4 : f32 to vector<128x128xf32>
    %7 = arith.subf %5, %6 : vector<128x128xf32>
    %8 = arith.select %4, %2, %7 : vector<128x128xi1>, vector<128x128xf32>
    %c0_5 = arith.constant 0 : index
    %c0_6 = arith.constant 0 : index
    %c0_7 = arith.constant 0 : index
    %9 = vector.load %arg4[%c0_5, %c0_6, %c0_7] : memref<1x128x128xbf16, #tpu.memory_space<vmem>>, vector<1x128x128xbf16>
    %10 = vector.shape_cast %9 : vector<1x128x128xbf16> to vector<128x128xbf16>
    %11 = arith.truncf %8 : vector<128x128xf32> to vector<128x128xbf16>
    %cst_8 = arith.constant dense<0.000000e+00> : vector<128x128xf32>
    %12 = tpu.matmul %10, %11, %cst_8 {dimension_numbers = #tpu.dot_dimension_numbers<[1], [0], [0], [1], [0, 0, 1, 1], [], []>} : vector<128x128xbf16>, vector<128x128xbf16>, vector<128x128xf32> -> vector<128x128xf32>
    %c0_9 = arith.constant 0 : index
    %c0_10 = arith.constant 0 : index
    %c0_11 = arith.constant 0 : index
    %13 = vector.load %arg5[%c0_9, %c0_10, %c0_11] : memref<1x128x1xf32, #tpu.memory_space<vmem>>, vector<1x128x1xf32>
    %14 = vector.shape_cast %13 : vector<1x128x1xf32> to vector<128x1xf32>
    %15 = vector.broadcast %14 : vector<128x1xf32> to vector<128x128xf32>
    %16 = arith.addf %12, %15 : vector<128x128xf32>
    %cst_12 = arith.constant 0.000000e+00 : f32
    %17 = vector.broadcast %cst_12 : f32 to vector<128x128xf32>
    %18 = arith.cmpf ogt, %16, %17 : vector<128x128xf32>
    %19 = math.exp %16 : vector<128x128xf32>
    %cst_13 = arith.constant 1.000000e+00 : f32
    %20 = vector.broadcast %cst_13 : f32 to vector<128x128xf32>
    %21 = arith.subf %19, %20 : vector<128x128xf32>
    %22 = arith.select %18, %16, %21 : vector<128x128xi1>, vector<128x128xf32>
    %c0_14 = arith.constant 0 : index
    %c0_15 = arith.constant 0 : index
    %23 = vector.load %arg6[%c0_14, %c0_15] : memref<8x128xbf16, #tpu.memory_space<vmem>>, vector<8x128xbf16>
    %24 = arith.truncf %22 : vector<128x128xf32> to vector<128x128xbf16>
    %cst_16 = arith.constant dense<0.000000e+00> : vector<8x128xf32>
    %25 = tpu.matmul %23, %24, %cst_16 {dimension_numbers = #tpu.dot_dimension_numbers<[1], [0], [0], [1], [0, 0, 1, 1], [], []>} : vector<8x128xbf16>, vector<128x128xbf16>, vector<8x128xf32> -> vector<8x128xf32>
    %c0_17 = arith.constant 0 : index
    %c0_18 = arith.constant 0 : index
    %26 = vector.load %arg7[%c0_17, %c0_18] : memref<8x1xf32, #tpu.memory_space<vmem>>, vector<8x1xf32>
    %27 = vector.broadcast %26 : vector<8x1xf32> to vector<8x128xf32>
    %28 = arith.addf %25, %27 : vector<8x128xf32>
    %cst_19 = arith.constant 5.000000e-01 : f32
    %29 = vector.broadcast %cst_19 : f32 to vector<8x128xf32>
    %30 = arith.mulf %29, %28 : vector<8x128xf32>
    %31 = math.tanh %30 : vector<8x128xf32>
    %cst_20 = arith.constant 1.000000e+00 : f32
    %32 = vector.broadcast %cst_20 : f32 to vector<8x128xf32>
    %33 = arith.addf %31, %32 : vector<8x128xf32>
    %cst_21 = arith.constant 5.000000e-01 : f32
    %34 = vector.broadcast %cst_21 : f32 to vector<8x128xf32>
    %35 = arith.mulf %34, %33 : vector<8x128xf32>
    %c0_22 = arith.constant 0 : index
    %c0_23 = arith.constant 0 : index
    %36 = vector.load %arg8[%c0_22, %c0_23] : memref<8x1xf32, #tpu.memory_space<vmem>>, vector<8x1xf32>
    %c0_24 = arith.constant 0 : index
    %c0_25 = arith.constant 0 : index
    %37 = vector.load %arg9[%c0_24, %c0_25] : memref<8x1xf32, #tpu.memory_space<vmem>>, vector<8x1xf32>
    %38 = vector.broadcast %37 : vector<8x1xf32> to vector<8x128xf32>
    %39 = arith.mulf %35, %38 : vector<8x128xf32>
    %40 = vector.broadcast %36 : vector<8x1xf32> to vector<8x128xf32>
    %41 = arith.addf %40, %39 : vector<8x128xf32>
    %c0_26 = arith.constant 0 : index
    %c0_27 = arith.constant 0 : index
    %42 = vector.load %arg11[%c0_26, %c0_27] : memref<8x128xf32, #tpu.memory_space<vmem>>, vector<8x128xf32>
    tpu.vector_store %arg11[%c0_26, %c0_27], %41 {strides = array<i32>} : memref<8x128xf32, #tpu.memory_space<vmem>>, vector<8x128xf32>,
    %43 = vector.extract_strided_slice %41 {offsets = [0, 0], sizes = [1, 128], strides = [1, 1]} : vector<8x128xf32> to vector<1x128xf32>
    %44 = vector.extract_strided_slice %41 {offsets = [1, 0], sizes = [1, 128], strides = [1, 1]} : vector<8x128xf32> to vector<1x128xf32>
    %45 = vector.extract_strided_slice %41 {offsets = [2, 0], sizes = [1, 128], strides = [1, 1]} : vector<8x128xf32> to vector<1x128xf32>
    %46 = vector.extract_strided_slice %41 {offsets = [3, 0], sizes = [1, 128], strides = [1, 1]} : vector<8x128xf32> to vector<1x128xf32>
    %c0_28 = arith.constant 0 : index
    %c0_29 = arith.constant 0 : index
    %47 = vector.load %arg2[%c0_28, %c0_29] : memref<8x1xf32, #tpu.memory_space<vmem>>, vector<8x1xf32>
    %cst_30 = arith.constant 0.000000e+00 : f32
    %48 = vector.broadcast %cst_30 : f32 to vector<8x1xf32>
    %49 = arith.subf %48, %47 : vector<8x1xf32>
    %50 = vector.broadcast %49 : vector<8x1xf32> to vector<8x128xf32>
    %51 = vector.broadcast %45 : vector<1x128xf32> to vector<8x128xf32>
    %52 = arith.mulf %50, %51 : vector<8x128xf32>
    %53 = math.exp %52 : vector<8x128xf32>
    %54 = vector.broadcast %44 : vector<1x128xf32> to vector<8x128xf32>
    %55 = arith.mulf %54, %53 : vector<8x128xf32>
    %cst_31 = arith.constant 1.000000e+00 : f32
    %56 = vector.broadcast %cst_31 : f32 to vector<1x128xf32>
    %57 = arith.subf %56, %44 : vector<1x128xf32>
    %cst_32 = arith.constant 0.000000e+00 : f32
    %58 = vector.broadcast %cst_32 : f32 to vector<8x1xf32>
    %59 = arith.subf %58, %47 : vector<8x1xf32>
    %60 = vector.broadcast %59 : vector<8x1xf32> to vector<8x128xf32>
    %61 = vector.broadcast %43 : vector<1x128xf32> to vector<8x128xf32>
    %62 = arith.mulf %60, %61 : vector<8x128xf32>
    %63 = math.exp %62 : vector<8x128xf32>
    %64 = vector.broadcast %57 : vector<1x128xf32> to vector<8x128xf32>
    %65 = arith.mulf %64, %63 : vector<8x128xf32>
    %66 = arith.addf %55, %65 : vector<8x128xf32>
    %67 = vector.broadcast %46 : vector<1x128xf32> to vector<8x128xf32>
    %68 = arith.mulf %67, %66 : vector<8x128xf32>
    %c0_33 = arith.constant 0 : index
    %c0_34 = arith.constant 0 : index
    %69 = vector.load %arg10[%c0_33, %c0_34] : memref<8x128xf32, #tpu.memory_space<vmem>>, vector<8x128xf32>
    tpu.vector_store %arg10[%c0_33, %c0_34], %68 {strides = array<i32>} : memref<8x128xf32, #tpu.memory_space<vmem>>, vector<8x128xf32>,
    return
  }
  func.func @transform_0(%arg0: i32) -> (i32, i32) {
    %c0_i32 = arith.constant 0 : i32
    %c0_i32_0 = arith.constant 0 : i32
    return %c0_i32, %arg0 : i32, i32
  }
  func.func @transform_1(%arg0: i32) -> (i32, i32) {
    %c0_i32 = arith.constant 0 : i32
    %c0_i32_0 = arith.constant 0 : i32
    %c0_i32_1 = arith.constant 0 : i32
    return %c0_i32, %c0_i32_0 : i32, i32
  }
  func.func @transform_2(%arg0: i32) -> (i32, i32) {
    %c0_i32 = arith.constant 0 : i32
    %c0_i32_0 = arith.constant 0 : i32
    %c0_i32_1 = arith.constant 0 : i32
    return %c0_i32, %c0_i32_0 : i32, i32
  }
  func.func @transform_3(%arg0: i32) -> (i32, i32, i32) {
    %c0_i32 = arith.constant 0 : i32
    %c0_i32_0 = arith.constant 0 : i32
    %c0_i32_1 = arith.constant 0 : i32
    %c0_i32_2 = arith.constant 0 : i32
    return %c0_i32, %c0_i32_0, %c0_i32_1 : i32, i32, i32
  }
  func.func @transform_4(%arg0: i32) -> (i32, i32, i32) {
    %c0_i32 = arith.constant 0 : i32
    %c0_i32_0 = arith.constant 0 : i32
    %c0_i32_1 = arith.constant 0 : i32
    %c0_i32_2 = arith.constant 0 : i32
    return %c0_i32, %c0_i32_0, %c0_i32_1 : i32, i32, i32
  }
  func.func @transform_5(%arg0: i32) -> (i32, i32) {
    %c0_i32 = arith.constant 0 : i32
    %c0_i32_0 = arith.constant 0 : i32
    %c0_i32_1 = arith.constant 0 : i32
    return %c0_i32, %c0_i32_0 : i32, i32
  }
  func.func @transform_6(%arg0: i32) -> (i32, i32) {
    %c0_i32 = arith.constant 0 : i32
    %c0_i32_0 = arith.constant 0 : i32
    %c0_i32_1 = arith.constant 0 : i32
    return %c0_i32, %c0_i32_0 : i32, i32
  }
  func.func @transform_7(%arg0: i32) -> (i32, i32) {
    %c0_i32 = arith.constant 0 : i32
    %c0_i32_0 = arith.constant 0 : i32
    %c0_i32_1 = arith.constant 0 : i32
    return %c0_i32, %c0_i32_0 : i32, i32
  }
  func.func @transform_8(%arg0: i32) -> (i32, i32) {
    %c0_i32 = arith.constant 0 : i32
    %c0_i32_0 = arith.constant 0 : i32
    %c0_i32_1 = arith.constant 0 : i32
    return %c0_i32, %c0_i32_0 : i32, i32
  }
  func.func @transform_9(%arg0: i32) -> (i32, i32) {
    %c0_i32 = arith.constant 0 : i32
    %c0_i32_0 = arith.constant 0 : i32
    return %c0_i32, %arg0 : i32, i32
  }
  func.func @transform_10(%arg0: i32) -> (i32, i32) {
    %c0_i32 = arith.constant 0 : i32
    %c0_i32_0 = arith.constant 0 : i32
    return %c0_i32, %arg0 : i32, i32
  }
}

</mosaic_0001>

<llo_original>
// kernel: _forward_jit.1
$region0: #{_forward_jit.1}
  #allocation0 [shape = 'u32[]', space=smem, size = 0x4, offset = 0x4, fixed_abs, tag = 'smem constant byte address 0x4 - core index']
  #allocation1 [shape = 'u32[72,128]{1,0:T(1,128)}', space=vmem, size = 0x9000, scoped, tag = 'internal scratch']
  %s0 = inlined_call_operand.vmem [shape: bf16[9,128], index: 0, kind: input, shape index: {}]
  %s1 = inlined_call_operand.vmem [shape: f32[8,1], index: 1, kind: input, shape index: {}]
  %s2 = inlined_call_operand.vmem [shape: bf16[128,9], index: 2, kind: input, shape index: {}]
  %s3 = inlined_call_operand.vmem [shape: bf16[1,128,128], index: 3, kind: input, shape index: {}]
  %s4 = inlined_call_operand.vmem [shape: f32[1,128,1], index: 4, kind: input, shape index: {}]
  %s5 = inlined_call_operand.vmem [shape: bf16[8,128], index: 5, kind: input, shape index: {}]
  %s6 = inlined_call_operand.vmem [shape: f32[8,1], index: 6, kind: input, shape index: {}]
  %s7 = inlined_call_operand.vmem [shape: f32[8,1], index: 7, kind: input, shape index: {}]
  %s8 = inlined_call_operand.vmem [shape: f32[8,1], index: 8, kind: input, shape index: {}]
  %s9 = inlined_call_operand.vmem [shape: f32[8,128], index: 9, kind: output, shape index: {0}]
  %s10 = inlined_call_operand.vmem [shape: f32[8,128], index: 10, kind: output, shape index: {1}]
  %11 = xla_tuple %s9, %s10
  %s12 = sld [smem:[#allocation0]]
  $region54: #{_forward_jit.1} parent=0
    _
  %s14 = ssub.s32 1, %s12
  %s15 = scalar_select 0, %s14, %s12
  // Predicated region
  $region2: #{_forward_jit.1} parent=0 // pred_check
    _
  $region3: #{_forward_jit.1} parent=0 // pred_check_branch
    %17 = sbr.rel (0) target = $region5
  $region4: #{_forward_jit.1} parent=0 // pred_region
    _
  $region5: #{_forward_jit.1} parent=0 // pred_fallthru
    _
  // Predicated region
  $region6: #{_forward_jit.1} parent=0 // pred_check
    _
  $region7: #{_forward_jit.1} parent=0 // pred_check_branch
    %19 = sbr.rel (0) target = $region9
  $region8: #{_forward_jit.1} parent=0 // pred_region
    _
  $region9: #{_forward_jit.1} parent=0 // pred_fallthru
    _
  // Predicated region
  $region10: #{_forward_jit.1} parent=0 // pred_check
    _
  $region11: #{_forward_jit.1} parent=0 // pred_check_branch
    %21 = sbr.rel (0) target = $region13
  $region12: #{_forward_jit.1} parent=0 // pred_region
    _
  $region13: #{_forward_jit.1} parent=0 // pred_fallthru
    _
  // Predicated region
  $region14: #{_forward_jit.1} parent=0 // pred_check
    _
  $region15: #{_forward_jit.1} parent=0 // pred_check_branch
    %23 = sbr.rel (0) target = $region17
  $region16: #{_forward_jit.1} parent=0 // pred_region
    _
  $region17: #{_forward_jit.1} parent=0 // pred_fallthru
    _
  // Predicated region
  $region18: #{_forward_jit.1} parent=0 // pred_check
    _
  $region19: #{_forward_jit.1} parent=0 // pred_check_branch
    %25 = sbr.rel (0) target = $region21
  $region20: #{_forward_jit.1} parent=0 // pred_region
    _
  $region21: #{_forward_jit.1} parent=0 // pred_fallthru
    _
  // Predicated region
  $region22: #{_forward_jit.1} parent=0 // pred_check
    _
  $region23: #{_forward_jit.1} parent=0 // pred_check_branch
    %27 = sbr.rel (0) target = $region25
  $region24: #{_forward_jit.1} parent=0 // pred_region
    _
  $region25: #{_forward_jit.1} parent=0 // pred_fallthru
    _
  // Predicated region
  $region26: #{_forward_jit.1} parent=0 // pred_check
    _
  $region27: #{_forward_jit.1} parent=0 // pred_check_branch
    %29 = sbr.rel (0) target = $region29
  $region28: #{_forward_jit.1} parent=0 // pred_region
    _
  $region29: #{_forward_jit.1} parent=0 // pred_fallthru
    _
  // Predicated region
  $region30: #{_forward_jit.1} parent=0 // pred_check
    _
  $region31: #{_forward_jit.1} parent=0 // pred_check_branch
    %31 = sbr.rel (0) target = $region33
  $region32: #{_forward_jit.1} parent=0 // pred_region
    _
  $region33: #{_forward_jit.1} parent=0 // pred_fallthru
    _
  // Predicated region
  $region34: #{_forward_jit.1} parent=0 // pred_check
    _
  $region35: #{_forward_jit.1} parent=0 // pred_check_branch
    %33 = sbr.rel (0) target = $region37
  $region36: #{_forward_jit.1} parent=0 // pred_region
    _
  $region37: #{_forward_jit.1} parent=0 // pred_fallthru
    _
  %v35 = vld [vmem:[%s2] sm:$0xf]
  %v36 = vld [vmem:[%s2 + $0x4] sm:$0xf]
  %v37 = vld [vmem:[%s2 + $0x8] sm:$0xf]
  %v38 = vld [vmem:[%s2 + $0xc] sm:$0xf]
  %v39 = vld [vmem:[%s2 + $0x10] sm:$0xf]
  %v40 = vld [vmem:[%s2 + $0x14] sm:$0xf]
  %v41 = vld [vmem:[%s2 + $0x18] sm:$0xf]
  %v42 = vld [vmem:[%s2 + $0x1c] sm:$0xf]
  %v43 = vld [vmem:[%s2 + $0x20] sm:$0xf]
  %v44 = vld [vmem:[%s2 + $0x24] sm:$0xf]
  %v45 = vld [vmem:[%s2 + $0x28] sm:$0xf]
  %v46 = vld [vmem:[%s2 + $0x2c] sm:$0xf]
  %v47 = vld [vmem:[%s2 + $0x30] sm:$0xf]
  %v48 = vld [vmem:[%s2 + $0x34] sm:$0xf]
  %v49 = vld [vmem:[%s2 + $0x38] sm:$0xf]
  %v50 = vld [vmem:[%s2 + $0x3c] sm:$0xf]
  %v51 = vld [vmem:[%s0] sm:$0xf]
  %v52 = vld [vmem:[%s0 + $0x4] sm:$0x1]
  %v69 = vunpack.c.l.b16 %v35
  %v70 = vunpack.c.l.b16 %v36
  %v71 = vunpack.c.l.b16 %v37
  %v72 = vunpack.c.l.b16 %v38
  %v73 = vunpack.c.l.b16 %v39
  %v74 = vunpack.c.l.b16 %v40
  %v75 = vunpack.c.l.b16 %v41
  %v76 = vunpack.c.l.b16 %v42
  %v77 = vunpack.c.l.b16 %v43
  %v78 = vunpack.c.l.b16 %v44
  %v79 = vunpack.c.l.b16 %v45
  %v80 = vunpack.c.l.b16 %v46
  %v81 = vunpack.c.l.b16 %v47
  %v82 = vunpack.c.l.b16 %v48
  %v83 = vunpack.c.l.b16 %v49
  %v84 = vunpack.c.l.b16 %v50
  %v85 = vpack.c.b16 %v70, %v69
  %v86 = vpack.c.b16 %v72, %v71
  %v87 = vpack.c.b16 %v74, %v73
  %v88 = vpack.c.b16 %v76, %v75
  %v89 = vpack.c.b16 %v78, %v77
  %v90 = vpack.c.b16 %v80, %v79
  %v91 = vpack.c.b16 %v82, %v81
  %v92 = vpack.c.b16 %v84, %v83
  %v95 = vunpack.c.l.b16 %v51
  %v96 = vunpack.c.l.b16 %v52
  %v97 = vpack.c.b16 %v96, %v95
  %vm98 = vcmask 72704
  %v100 = vsel %vm98, %v85, 0
  %v103 = vsel %vm98, %v86, 0
  %v106 = vsel %vm98, %v87, 0
  %v109 = vsel %vm98, %v88, 0
  %v112 = vsel %vm98, %v89, 0
  %v115 = vsel %vm98, %v90, 0
  %v118 = vsel %vm98, %v91, 0
  %v121 = vsel %vm98, %v92, 0
  %vm123 = vcmask 1043456
  %vm124 = vcmask 1044480
  %v125 = vsel %vm123, 4294967295, 65535
  %v126 = vsel %vm124, %v125, 0
  %v128 = vand.u32 %v97, %v126
  %130 = vmatpush.bf16.msra.mxu0 0
  %131 = vmatpush.bf16.msra.mxu0 0
  %132 = vmatpush.bf16.msra.mxu0 0
  %133 = vmatpush.bf16.msra.mxu0 0
  %134 = vmatpush.bf16.msra.mxu0 0
  %135 = vmatpush.bf16.msra.mxu0 0
  %136 = vmatpush.bf16.msra.mxu0 0
  %137 = vmatpush.bf16.msra.mxu0 %v128
  %138 = vmatmul.bf16.gmra.mxu0 %v100
  %v139 = vpop.f32.mrf.mxu0
  %v140 = vadd.f32 0.0, %v139
  %v141 = vpop.f32.mrf.mxu0
  %v142 = vadd.f32 0.0, %v141
  %143 = vmatmul.bf16.gmra.mxu0 %v103
  %v144 = vpop.f32.mrf.mxu0
  %v145 = vadd.f32 0.0, %v144
  %v146 = vpop.f32.mrf.mxu0
  %v147 = vadd.f32 0.0, %v146
  %148 = vmatmul.bf16.gmra.mxu0 %v106
  %v149 = vpop.f32.mrf.mxu0
  %v150 = vadd.f32 0.0, %v149
  %v151 = vpop.f32.mrf.mxu0
  %v152 = vadd.f32 0.0, %v151
  %153 = vmatmul.bf16.gmra.mxu0 %v109
  %v154 = vpop.f32.mrf.mxu0
  %v155 = vadd.f32 0.0, %v154
  %v156 = vpop.f32.mrf.mxu0
  %v157 = vadd.f32 0.0, %v156
  %158 = vmatmul.bf16.gmra.mxu0 %v112
  %v159 = vpop.f32.mrf.mxu0
  %v160 = vadd.f32 0.0, %v159
  %v161 = vpop.f32.mrf.mxu0
  %v162 = vadd.f32 0.0, %v161
  %163 = vmatmul.bf16.gmra.mxu0 %v115
  %v164 = vpop.f32.mrf.mxu0
  %v165 = vadd.f32 0.0, %v164
  %v166 = vpop.f32.mrf.mxu0
  %v167 = vadd.f32 0.0, %v166
  %168 = vmatmul.bf16.gmra.mxu0 %v118
  %v169 = vpop.f32.mrf.mxu0
  %v170 = vadd.f32 0.0, %v169
  %v171 = vpop.f32.mrf.mxu0
  %v172 = vadd.f32 0.0, %v171
  %173 = vmatmul.bf16.gmra.mxu0 %v121
  %v174 = vpop.f32.mrf.mxu0
  %v175 = vadd.f32 0.0, %v174
  %v176 = vpop.f32.mrf.mxu0
  %v177 = vadd.f32 0.0, %v176
  %178 = vdwg.mxu0
  %vm179 = vcmp.gt.f32.partialorder %v140, 0.0
  %vm180 = vcmp.gt.f32.partialorder %v142, 0.0
  %vm181 = vcmp.gt.f32.partialorder %v145, 0.0
  %vm182 = vcmp.gt.f32.partialorder %v147, 0.0
  %vm183 = vcmp.gt.f32.partialorder %v150, 0.0
  %vm184 = vcmp.gt.f32.partialorder %v152, 0.0
  %vm185 = vcmp.gt.f32.partialorder %v155, 0.0
  %vm186 = vcmp.gt.f32.partialorder %v157, 0.0
  %vm187 = vcmp.gt.f32.partialorder %v160, 0.0
  %vm188 = vcmp.gt.f32.partialorder %v162, 0.0
  %vm189 = vcmp.gt.f32.partialorder %v165, 0.0
  %vm190 = vcmp.gt.f32.partialorder %v167, 0.0
  %vm191 = vcmp.gt.f32.partialorder %v170, 0.0
  %vm192 = vcmp.gt.f32.partialorder %v172, 0.0
  %vm193 = vcmp.gt.f32.partialorder %v175, 0.0
  %vm194 = vcmp.gt.f32.partialorder %v177, 0.0
  %v195 = vmul.f32 %v140, 1.442695
  %v196 = vpow.pop %v195
  %v197 = vmul.f32 %v142, 1.442695
  %v198 = vpow.pop %v197
  %v199 = vmul.f32 %v145, 1.442695
  %v200 = vpow.pop %v199
  %v201 = vmul.f32 %v147, 1.442695
  %v202 = vpow.pop %v201
  %v203 = vmul.f32 %v150, 1.442695
  %v204 = vpow.pop %v203
  %v205 = vmul.f32 %v152, 1.442695
  %v206 = vpow.pop %v205
  %v207 = vmul.f32 %v155, 1.442695
  %v208 = vpow.pop %v207
  %v209 = vmul.f32 %v157, 1.442695
  %v210 = vpow.pop %v209
  %v211 = vmul.f32 %v160, 1.442695
  %v212 = vpow.pop %v211
  %v213 = vmul.f32 %v162, 1.442695
  %v214 = vpow.pop %v213
  %v215 = vmul.f32 %v165, 1.442695
  %v216 = vpow.pop %v215
  %v217 = vmul.f32 %v167, 1.442695
  %v218 = vpow.pop %v217
  %v219 = vmul.f32 %v170, 1.442695
  %v220 = vpow.pop %v219
  %v221 = vmul.f32 %v172, 1.442695
  %v222 = vpow.pop %v221
  %v223 = vmul.f32 %v175, 1.442695
  %v224 = vpow.pop %v223
  %v225 = vmul.f32 %v177, 1.442695
  %v226 = vpow.pop %v225
  %v227 = vsub.f32 %v196, 1.0
  %v228 = vsub.f32 %v198, 1.0
  %v229 = vsub.f32 %v200, 1.0
  %v230 = vsub.f32 %v202, 1.0
  %v231 = vsub.f32 %v204, 1.0
  %v232 = vsub.f32 %v206, 1.0
  %v233 = vsub.f32 %v208, 1.0
  %v234 = vsub.f32 %v210, 1.0
  %v235 = vsub.f32 %v212, 1.0
  %v236 = vsub.f32 %v214, 1.0
  %v237 = vsub.f32 %v216, 1.0
  %v238 = vsub.f32 %v218, 1.0
  %v239 = vsub.f32 %v220, 1.0
  %v240 = vsub.f32 %v222, 1.0
  %v241 = vsub.f32 %v224, 1.0
  %v242 = vsub.f32 %v226, 1.0
  %v243 = vsel %vm179, %v140, %v227
  %v244 = vsel %vm180, %v142, %v228
  %v245 = vsel %vm181, %v145, %v229
  %v246 = vsel %vm182, %v147, %v230
  %v247 = vsel %vm183, %v150, %v231
  %v248 = vsel %vm184, %v152, %v232
  %v249 = vsel %vm185, %v155, %v233
  %v250 = vsel %vm186, %v157, %v234
  %v251 = vsel %vm187, %v160, %v235
  %v252 = vsel %vm188, %v162, %v236
  %v253 = vsel %vm189, %v165, %v237
  %v254 = vsel %vm190, %v167, %v238
  %v255 = vsel %vm191, %v170, %v239
  %v256 = vsel %vm192, %v172, %v240
  %v257 = vsel %vm193, %v175, %v241
  %v258 = vsel %vm194, %v177, %v242
  %v259 = vld [vmem:[%s3] sm:$0xf]
  %v260 = vld [vmem:[%s3 + $0x4] sm:$0xf]
  %v261 = vld [vmem:[%s3 + $0x8] sm:$0xf]
  %v262 = vld [vmem:[%s3 + $0xc] sm:$0xf]
  %v263 = vld [vmem:[%s3 + $0x10] sm:$0xf]
  %v264 = vld [vmem:[%s3 + $0x14] sm:$0xf]
  %v265 = vld [vmem:[%s3 + $0x18] sm:$0xf]
  %v266 = vld [vmem:[%s3 + $0x1c] sm:$0xf]
  %v267 = vld [vmem:[%s3 + $0x20] sm:$0xf]
  %v268 = vld [vmem:[%s3 + $0x24] sm:$0xf]
  %v269 = vld [vmem:[%s3 + $0x28] sm:$0xf]
  %v270 = vld [vmem:[%s3 + $0x2c] sm:$0xf]
  %v271 = vld [vmem:[%s3 + $0x30] sm:$0xf]
  %v272 = vld [vmem:[%s3 + $0x34] sm:$0xf]
  %v273 = vld [vmem:[%s3 + $0x38] sm:$0xf]
  %v274 = vld [vmem:[%s3 + $0x3c] sm:$0xf]
  %v275 = vpack.c.bf16 %v244, %v243
  %v276 = vpack.c.bf16 %v246, %v245
  %v277 = vpack.c.bf16 %v248, %v247
  %v278 = vpack.c.bf16 %v250, %v249
  %v279 = vpack.c.bf16 %v252, %v251
  %v280 = vpack.c.bf16 %v254, %v253
  %v281 = vpack.c.bf16 %v256, %v255
  %v282 = vpack.c.bf16 %v258, %v257
  %v283 = vld [vmem:[%s4] sm:$0xff]
  %v284 = vld [vmem:[%s4 + $0x8] sm:$0xff]
  %v285 = vld [vmem:[%s4 + $0x10] sm:$0xff]
  %v286 = vld [vmem:[%s4 + $0x18] sm:$0xff]
  %v287 = vld [vmem:[%s4 + $0x20] sm:$0xff]
  %v288 = vld [vmem:[%s4 + $0x28] sm:$0xff]
  %v289 = vld [vmem:[%s4 + $0x30] sm:$0xff]
  %v290 = vld [vmem:[%s4 + $0x38] sm:$0xff]
  %v291 = vld [vmem:[%s4 + $0x40] sm:$0xff]
  %v292 = vld [vmem:[%s4 + $0x48] sm:$0xff]
  %v293 = vld [vmem:[%s4 + $0x50] sm:$0xff]
  %v294 = vld [vmem:[%s4 + $0x58] sm:$0xff]
  %v295 = vld [vmem:[%s4 + $0x60] sm:$0xff]
  %v296 = vld [vmem:[%s4 + $0x68] sm:$0xff]
  %v297 = vld [vmem:[%s4 + $0x70] sm:$0xff]
  %v298 = vld [vmem:[%s4 + $0x78] sm:$0xff]
  %300 = vset.pattern.permute.xlu0 0
  %301 = vperm.xlu0 %300, %v283
  %v302 = vpop.permute.xlu0 %301
  %305 = vset.pattern.permute.xlu0 0
  %306 = vperm.xlu0 %305, %v284
  %v307 = vpop.permute.xlu0 %306
  %310 = vset.pattern.permute.xlu0 0
  %311 = vperm.xlu0 %310, %v285
  %v312 = vpop.permute.xlu0 %311
  %315 = vset.pattern.permute.xlu0 0
  %316 = vperm.xlu0 %315, %v286
  %v317 = vpop.permute.xlu0 %316
  %320 = vset.pattern.permute.xlu0 0
  %321 = vperm.xlu0 %320, %v287
  %v322 = vpop.permute.xlu0 %321
  %325 = vset.pattern.permute.xlu0 0
  %326 = vperm.xlu0 %325, %v288
  %v327 = vpop.permute.xlu0 %326
  %330 = vset.pattern.permute.xlu0 0
  %331 = vperm.xlu0 %330, %v289
  %v332 = vpop.permute.xlu0 %331
  %335 = vset.pattern.permute.xlu0 0
  %336 = vperm.xlu0 %335, %v290
  %v337 = vpop.permute.xlu0 %336
  %340 = vset.pattern.permute.xlu0 0
  %341 = vperm.xlu0 %340, %v291
  %v342 = vpop.permute.xlu0 %341
  %345 = vset.pattern.permute.xlu0 0
  %346 = vperm.xlu0 %345, %v292
  %v347 = vpop.permute.xlu0 %346
  %350 = vset.pattern.permute.xlu0 0
  %351 = vperm.xlu0 %350, %v293
  %v352 = vpop.permute.xlu0 %351
  %355 = vset.pattern.permute.xlu0 0
  %356 = vperm.xlu0 %355, %v294
  %v357 = vpop.permute.xlu0 %356
  %360 = vset.pattern.permute.xlu0 0
  %361 = vperm.xlu0 %360, %v295
  %v362 = vpop.permute.xlu0 %361
  %365 = vset.pattern.permute.xlu0 0
  %366 = vperm.xlu0 %365, %v296
  %v367 = vpop.permute.xlu0 %366
  %370 = vset.pattern.permute.xlu0 0
  %371 = vperm.xlu0 %370, %v297
  %v372 = vpop.permute.xlu0 %371
  %375 = vset.pattern.permute.xlu0 0
  %376 = vperm.xlu0 %375, %v298
  %v377 = vpop.permute.xlu0 %376
  %v395 = vunpack.c.l.b16 %v259
  %v396 = vunpack.c.l.b16 %v260
  %v397 = vunpack.c.l.b16 %v261
  %v398 = vunpack.c.l.b16 %v262
  %v399 = vunpack.c.l.b16 %v263
  %v400 = vunpack.c.l.b16 %v264
  %v401 = vunpack.c.l.b16 %v265
  %v402 = vunpack.c.l.b16 %v266
  %v403 = vunpack.c.l.b16 %v267
  %v404 = vunpack.c.l.b16 %v268
  %v405 = vunpack.c.l.b16 %v269
  %v406 = vunpack.c.l.b16 %v270
  %v407 = vunpack.c.l.b16 %v271
  %v408 = vunpack.c.l.b16 %v272
  %v409 = vunpack.c.l.b16 %v273
  %v410 = vunpack.c.l.b16 %v274
  %v411 = vpack.c.b16 %v396, %v395
  %v412 = vpack.c.b16 %v398, %v397
  %v413 = vpack.c.b16 %v400, %v399
  %v414 = vpack.c.b16 %v402, %v401
  %v415 = vpack.c.b16 %v404, %v403
  %v416 = vpack.c.b16 %v406, %v405
  %v417 = vpack.c.b16 %v408, %v407
  %v418 = vpack.c.b16 %v410, %v409
  %427 = vmatpush.bf16.msra.mxu0 %v282
  %428 = vmatpush.bf16.msra.mxu0 %v281
  %429 = vmatpush.bf16.msra.mxu0 %v280
  %430 = vmatpush.bf16.msra.mxu0 %v279
  %431 = vmatpush.bf16.msra.mxu0 %v278
  %432 = vmatpush.bf16.msra.mxu0 %v277
  %433 = vmatpush.bf16.msra.mxu0 %v276
  %434 = vmatpush.bf16.msra.mxu0 %v275
  %435 = vmatmul.bf16.gmra.mxu0 %v411
  %v436 = vpop.f32.mrf.mxu0
  %v437 = vadd.f32 %v302, %v436
  %v438 = vpop.f32.mrf.mxu0
  %v439 = vadd.f32 %v307, %v438
  %440 = vmatmul.bf16.gmra.mxu0 %v412
  %v441 = vpop.f32.mrf.mxu0
  %v442 = vadd.f32 %v312, %v441
  %v443 = vpop.f32.mrf.mxu0
  %v444 = vadd.f32 %v317, %v443
  %445 = vmatmul.bf16.gmra.mxu0 %v413
  %v446 = vpop.f32.mrf.mxu0
  %v447 = vadd.f32 %v322, %v446
  %v448 = vpop.f32.mrf.mxu0
  %v449 = vadd.f32 %v327, %v448
  %450 = vmatmul.bf16.gmra.mxu0 %v414
  %v451 = vpop.f32.mrf.mxu0
  %v452 = vadd.f32 %v332, %v451
  %v453 = vpop.f32.mrf.mxu0
  %v454 = vadd.f32 %v337, %v453
  %455 = vmatmul.bf16.gmra.mxu0 %v415
  %v456 = vpop.f32.mrf.mxu0
  %v457 = vadd.f32 %v342, %v456
  %v458 = vpop.f32.mrf.mxu0
  %v459 = vadd.f32 %v347, %v458
  %460 = vmatmul.bf16.gmra.mxu0 %v416
  %v461 = vpop.f32.mrf.mxu0
  %v462 = vadd.f32 %v352, %v461
  %v463 = vpop.f32.mrf.mxu0
  %v464 = vadd.f32 %v357, %v463
  %465 = vmatmul.bf16.gmra.mxu0 %v417
  %v466 = vpop.f32.mrf.mxu0
  %v467 = vadd.f32 %v362, %v466
  %v468 = vpop.f32.mrf.mxu0
  %v469 = vadd.f32 %v367, %v468
  %470 = vmatmul.bf16.gmra.mxu0 %v418
  %v471 = vpop.f32.mrf.mxu0
  %v472 = vadd.f32 %v372, %v471
  %v473 = vpop.f32.mrf.mxu0
  %v474 = vadd.f32 %v377, %v473
  %475 = vdwg.mxu0
  %vm476 = vcmp.gt.f32.partialorder %v437, 0.0
  %vm477 = vcmp.gt.f32.partialorder %v439, 0.0
  %vm478 = vcmp.gt.f32.partialorder %v442, 0.0
  %vm479 = vcmp.gt.f32.partialorder %v444, 0.0
  %vm480 = vcmp.gt.f32.partialorder %v447, 0.0
  %vm481 = vcmp.gt.f32.partialorder %v449, 0.0
  %vm482 = vcmp.gt.f32.partialorder %v452, 0.0
  %vm483 = vcmp.gt.f32.partialorder %v454, 0.0
  %vm484 = vcmp.gt.f32.partialorder %v457, 0.0
  %vm485 = vcmp.gt.f32.partialorder %v459, 0.0
  %vm486 = vcmp.gt.f32.partialorder %v462, 0.0
  %vm487 = vcmp.gt.f32.partialorder %v464, 0.0
  %vm488 = vcmp.gt.f32.partialorder %v467, 0.0
  %vm489 = vcmp.gt.f32.partialorder %v469, 0.0
  %vm490 = vcmp.gt.f32.partialorder %v472, 0.0
  %vm491 = vcmp.gt.f32.partialorder %v474, 0.0
  %v492 = vmul.f32 %v437, 1.442695
  %v493 = vpow.pop %v492
  %v494 = vmul.f32 %v439, 1.442695
  %v495 = vpow.pop %v494
  %v496 = vmul.f32 %v442, 1.442695
  %v497 = vpow.pop %v496
  %v498 = vmul.f32 %v444, 1.442695
  %v499 = vpow.pop %v498
  %v500 = vmul.f32 %v447, 1.442695
  %v501 = vpow.pop %v500
  %v502 = vmul.f32 %v449, 1.442695
  %v503 = vpow.pop %v502
  %v504 = vmul.f32 %v452, 1.442695
  %v505 = vpow.pop %v504
  %v506 = vmul.f32 %v454, 1.442695
  %v507 = vpow.pop %v506
  %v508 = vmul.f32 %v457, 1.442695
  %v509 = vpow.pop %v508
  %v510 = vmul.f32 %v459, 1.442695
  %v511 = vpow.pop %v510
  %v512 = vmul.f32 %v462, 1.442695
  %v513 = vpow.pop %v512
  %v514 = vmul.f32 %v464, 1.442695
  %v515 = vpow.pop %v514
  %v516 = vmul.f32 %v467, 1.442695
  %v517 = vpow.pop %v516
  %v518 = vmul.f32 %v469, 1.442695
  %v519 = vpow.pop %v518
  %v520 = vmul.f32 %v472, 1.442695
  %v521 = vpow.pop %v520
  %v522 = vmul.f32 %v474, 1.442695
  %v523 = vpow.pop %v522
  %v524 = vsub.f32 %v493, 1.0
  %v525 = vsub.f32 %v495, 1.0
  %v526 = vsub.f32 %v497, 1.0
  %v527 = vsub.f32 %v499, 1.0
  %v528 = vsub.f32 %v501, 1.0
  %v529 = vsub.f32 %v503, 1.0
  %v530 = vsub.f32 %v505, 1.0
  %v531 = vsub.f32 %v507, 1.0
  %v532 = vsub.f32 %v509, 1.0
  %v533 = vsub.f32 %v511, 1.0
  %v534 = vsub.f32 %v513, 1.0
  %v535 = vsub.f32 %v515, 1.0
  %v536 = vsub.f32 %v517, 1.0
  %v537 = vsub.f32 %v519, 1.0
  %v538 = vsub.f32 %v521, 1.0
  %v539 = vsub.f32 %v523, 1.0
  %v540 = vsel %vm476, %v437, %v524
  %v541 = vsel %vm477, %v439, %v525
  %v542 = vsel %vm478, %v442, %v526
  %v543 = vsel %vm479, %v444, %v527
  %v544 = vsel %vm480, %v447, %v528
  %v545 = vsel %vm481, %v449, %v529
  %v546 = vsel %vm482, %v452, %v530
  %v547 = vsel %vm483, %v454, %v531
  %v548 = vsel %vm484, %v457, %v532
  %v549 = vsel %vm485, %v459, %v533
  %v550 = vsel %vm486, %v462, %v534
  %v551 = vsel %vm487, %v464, %v535
  %v552 = vsel %vm488, %v467, %v536
  %v553 = vsel %vm489, %v469, %v537
  %v554 = vsel %vm490, %v472, %v538
  %v555 = vsel %vm491, %v474, %v539
  %v556 = vld [vmem:[%s5] sm:$0xf]
  %v557 = vpack.c.bf16 %v541, %v540
  %v558 = vpack.c.bf16 %v543, %v542
  %v559 = vpack.c.bf16 %v545, %v544
  %v560 = vpack.c.bf16 %v547, %v546
  %v561 = vpack.c.bf16 %v549, %v548
  %v562 = vpack.c.bf16 %v551, %v550
  %v563 = vpack.c.bf16 %v553, %v552
  %v564 = vpack.c.bf16 %v555, %v554
  %v565 = vld [vmem:[%s6] sm:$0xff]
  %567 = vset.pattern.permute.xlu0 0
  %568 = vperm.xlu0 %567, %v565
  %v569 = vpop.permute.xlu0 %568
  %571 = vmatpush.bf16.msra.mxu0 %v564
  %572 = vmatpush.bf16.msra.mxu0 %v563
  %573 = vmatpush.bf16.msra.mxu0 %v562
  %574 = vmatpush.bf16.msra.mxu0 %v561
  %575 = vmatpush.bf16.msra.mxu0 %v560
  %576 = vmatpush.bf16.msra.mxu0 %v559
  %577 = vmatpush.bf16.msra.mxu0 %v558
  %578 = vmatpush.bf16.msra.mxu0 %v557
  %579 = vmatmul.bf16.gmra.mxu0 %v556
  %v580 = vpop.f32.mrf.mxu0
  %v581 = vadd.f32 %v569, %v580
  %v582 = vpop.f32.mrf.mxu0
  %583 = vdwg.mxu0
  %v584 = vmul.f32 %v581, 0.5
  %v585 = vtanh.pop %v584
  %v586 = vadd.f32 %v585, 1.0
  %v587 = vmul.f32 %v586, 0.5
  %v588 = vld [vmem:[%s7] sm:$0xff]
  %v589 = vld [vmem:[%s8] sm:$0xff]
  %591 = vset.pattern.permute.xlu0 0
  %592 = vperm.xlu0 %591, %v589
  %v593 = vpop.permute.xlu0 %592
  %v595 = vmul.f32 %v587, %v593
  %597 = vset.pattern.permute.xlu0 0
  %598 = vperm.xlu0 %597, %v588
  %v599 = vpop.permute.xlu0 %598
  %v601 = vadd.f32 %v599, %v595
  %602 = vst [vmem:[%s10] sm:$0xff] %v601
  %v603 = vld [vmem:[%s1] sm:$0xff]
  %v604 = vsub.f32 0.0, %v603
  %606 = vset.pattern.permute.xlu0 0
  %607 = vperm.xlu0 %606, %v604
  %v608 = vpop.permute.xlu0 %607
  %v610 = vperm.slane %v601, 2
  %v611 = vmul.f32 %v608, %v610
  %v612 = vmul.f32 %v611, 1.442695
  %v613 = vpow.pop %v612
  %v614 = vperm.slane %v601, 1
  %v615 = vmul.f32 %v614, %v613
  %v616 = vsub.f32 1.0, %v601
  %v617 = vperm.slane %v601, 0
  %v618 = vmul.f32 %v608, %v617
  %v619 = vmul.f32 %v618, 1.442695
  %v620 = vpow.pop %v619
  %v621 = vperm.slane %v616, 1
  %v622 = vmul.f32 %v621, %v620
  %v623 = vadd.f32 %v615, %v622
  %v624 = vperm.slane %v601, 3
  %v625 = vmul.f32 %v624, %v623
  %626 = vst [vmem:[%s9] sm:$0xff] %v625
  // Predicated region
  $region38: #{_forward_jit.1} parent=0 // pred_check
    _
  $region39: #{_forward_jit.1} parent=0 // pred_check_branch
    %628 = sbr.rel (0) target = $region41
  $region40: #{_forward_jit.1} parent=0 // pred_region
    _
  $region41: #{_forward_jit.1} parent=0 // pred_fallthru
    _
  // Predicated region
  $region42: #{_forward_jit.1} parent=0 // pred_check
    _
  $region43: #{_forward_jit.1} parent=0 // pred_check_branch
    %630 = sbr.rel (0) target = $region45
  $region44: #{_forward_jit.1} parent=0 // pred_region
    _
  $region45: #{_forward_jit.1} parent=0 // pred_fallthru
    _
  // Predicated region
  $region46: #{_forward_jit.1} parent=0 // pred_check
    _
  $region47: #{_forward_jit.1} parent=0 // pred_check_branch
    %632 = sbr.rel (0) target = $region49
  $region48: #{_forward_jit.1} parent=0 // pred_region
    _
  $region49: #{_forward_jit.1} parent=0 // pred_fallthru
    _
  // Predicated region
  $region50: #{_forward_jit.1} parent=0 // pred_check
    _
  $region51: #{_forward_jit.1} parent=0 // pred_check_branch
    %634 = sbr.rel (0) target = $region53
  $region52: #{_forward_jit.1} parent=0 // pred_region
    _
  $region53: #{_forward_jit.1} parent=0 // pred_fallthru
    _

</llo_original>
